<compile_context>
chip_gen: v7x
topology: tpu7x:2x2x1
jax: 0.10.0
libtpu: 0.0.40
codegen_flags: <defaults>
</compile_context>

<pallas_src>
import functools

import jax
import jax.numpy as jnp
from jax.experimental import pallas as pl
from jax.experimental.pallas import tpu as pltpu

_LANES = 512  # preferred lane-dense width when the flat size allows it


def _vmem_capacity_bytes():
    try:
        return int(pltpu.get_tpu_info().vmem_capacity_bytes)
    except Exception:
        return 64 * 1024 * 1024  # conservative default (v7x per-core VMEM)


def _mse_partial_kernel(pred_ref, tgt_ref, mask_ref, loss_out_ref, mask_out_ref,
                        *, rows_per_block, total_rows, needs_tail_mask):
    """One grid step: reduce a (rows_per_block, W) slab to two scalar partials.

    Hot loop is pure streaming VPU work (cast, sub, 2 muls, accumulating adds);
    the final cross-lane reduce per block rides the otherwise-idle XLU.
    """
    p = pred_ref[...].astype(jnp.float32)
    t = tgt_ref[...].astype(jnp.float32)
    m = mask_ref[...].astype(jnp.float32)
    r = p - t
    loss = m * r * r
    if needs_tail_mask:
        # Last block over-reaches the row count: its out-of-bounds rows hold
        # undefined data (possibly Inf/NaN), so select 0 via jnp.where instead
        # of relying on garbage * 0.
        base = pl.program_id(0) * rows_per_block
        row = jax.lax.broadcasted_iota(jnp.int32, p.shape, 0)
        valid = (base + row) < total_rows
        loss = jnp.where(valid, loss, 0.0)
        m = jnp.where(valid, m, 0.0)
    loss_out_ref[...] = jnp.full(loss_out_ref.shape, jnp.sum(loss), jnp.float32)
    mask_out_ref[...] = jnp.full(mask_out_ref.shape, jnp.sum(m), jnp.float32)


def _masked_sums(prediction, target, mask):
    """Returns (sum(mask*(pred-tgt)^2), sum(mask)) as f32 scalars."""
    n = prediction.size
    last = prediction.shape[-1]

    # Free (contiguous, bitcast) 2D views; never pad / copy in HBM.
    w = _LANES if (n % _LANES == 0 and n > 0) else last
    p2 = prediction.reshape(-1, w)
    t2 = target.reshape(-1, w)
    m2 = mask.reshape(-1, w)
    rows = p2.shape[0]

    # Per-chip tile sizing: largest input tile ~8 MiB on 128-MiB-VMEM parts
    # (v5e/v6e), ~4 MiB on 64-MiB parts (v7x).  Rows are a multiple of 32 so
    # the sublane-blocked dim stays legal for int8/bf16 inputs in multi-block
    # configurations.
    big_vmem = _vmem_capacity_bytes() >= 96 * 1024 * 1024
    target_tile_bytes = (8 if big_vmem else 4) * 1024 * 1024
    vmem_limit = (56 if big_vmem else 40) * 1024 * 1024
    max_itemsize = max(p2.dtype.itemsize, t2.dtype.itemsize, m2.dtype.itemsize)
    max_rows = max(32, (target_tile_bytes // max(w * max_itemsize, 1)) // 32 * 32)

    if rows <= max_rows:
        rows_per_block = rows  # single block with full dims (always legal)
    else:
        rows_per_block = max_rows
    n_blocks = pl.cdiv(rows, rows_per_block)
    needs_tail_mask = (rows % rows_per_block) != 0

    kernel = functools.partial(
        _mse_partial_kernel,
        rows_per_block=rows_per_block,
        total_rows=rows,
        needs_tail_mask=needs_tail_mask,
    )

    in_spec = pl.BlockSpec((rows_per_block, w), lambda i: (i, 0))
    out_spec = pl.BlockSpec((1, 8, 128), lambda i: (i, 0, 0))
    out_sds = jax.ShapeDtypeStruct((n_blocks, 8, 128), jnp.float32)

    cost = pl.CostEstimate(
        flops=6 * n,
        transcendentals=0,
        bytes_accessed=(p2.nbytes + t2.nbytes + m2.nbytes
                        + 2 * n_blocks * 8 * 128 * 4),
    )

    loss_parts, mask_parts = pl.pallas_call(
        kernel,
        out_shape=(out_sds, out_sds),
        grid=(n_blocks,),
        in_specs=[in_spec, in_spec, in_spec],
        out_specs=(out_spec, out_spec),
        compiler_params=pltpu.CompilerParams(
            dimension_semantics=("parallel",),   # per-block partials -> race-free
            vmem_limit_bytes=vmem_limit,
        ),
        cost_estimate=cost,
    )(p2, t2, m2)

    loss_sum = jnp.sum(loss_parts[:, 0, 0])
    mask_sum = jnp.sum(mask_parts[:, 0, 0])
    return loss_sum, mask_sum


@jax.jit
def mse_loss(prediction, target, mask):
    """Batch-based masked MSE: sum_b(image_loss_b) / sum_b(2 * M_b),
    returning 0.0 if the divisor is zero (matches reduction_batch_based).

    Inputs are streamed in their native dtypes (bf16/f32 pred+target,
    int8/bool/f32 mask); all math happens in f32 on-chip.
    """
    loss_sum, mask_sum = _masked_sums(prediction, target, mask)
    divisor = 2.0 * mask_sum
    safe_div = jnp.where(divisor == 0.0, 1.0, divisor)
    return jnp.where(divisor == 0.0, 0.0, loss_sum / safe_div)


class MSELoss:
    # TODO(synk): only the 'batch-based' reduction has a Pallas path;
    # 'image-based' (per-image normalize then mean) is not implemented.
    def __init__(self, reduction="batch-based"):
        assert reduction == "batch-based"

    def __call__(self, prediction, target, mask):
        return mse_loss(prediction, target, mask)


if __name__ == "__main__":
    key = jax.random.PRNGKey(0)
    k1, k2, k3 = jax.random.split(key, 3)
    B, H, W = 2, 16, 16
    prediction = jax.random.normal(k1, (B, H, W), dtype=jnp.float32)
    target = jax.random.normal(k2, (B, H, W), dtype=jnp.float32)
    # Keep the mask narrow end-to-end (int8); the kernel upcasts on-chip.
    mask = (jax.random.uniform(k3, (B, H, W)) > 0.3).astype(jnp.int8)

    loss_fn = MSELoss()
    out = loss_fn(prediction, target, mask)
    jax.block_until_ready(out)

    # Sanity check against plain-JAX reference (module semantics).
    maskf = mask.astype(jnp.float32)
    res = prediction - target
    image_loss = jnp.sum(maskf * res * res, axis=(1, 2))
    M = jnp.sum(maskf, axis=(1, 2))
    ref = jnp.sum(image_loss) / jnp.sum(2.0 * M)
    assert jnp.allclose(out, ref, rtol=1e-5, atol=1e-5), (out, ref)

    print("KERNEL_OK")
</pallas_src>

<mosaic_0001>
module attributes {stable_mosaic.version = 11 : i64} {
  func.func @_mse_partial_kernel(%arg0: i32, %arg1: memref<1x512xf32, #tpu.memory_space<vmem>>, %arg2: memref<1x512xf32, #tpu.memory_space<vmem>>, %arg3: memref<1x512xi8, #tpu.memory_space<vmem>>, %arg4: memref<1x8x128xf32, #tpu.memory_space<vmem>>, %arg5: memref<1x8x128xf32, #tpu.memory_space<vmem>>) attributes {dimension_semantics = [#tpu.dimension_semantics<parallel>], iteration_bounds = array<i64: 1>, scalar_prefetch = 0 : i64, scratch_operands = 0 : i64, tpu.core_type = #tpu.core_type<tc>, window_params = [{transform_indices = @transform_0, window_bounds = array<i64: 1, 512>}, {transform_indices = @transform_1, window_bounds = array<i64: 1, 512>}, {transform_indices = @transform_2, window_bounds = array<i64: 1, 512>}, {transform_indices = @transform_3, window_bounds = array<i64: 1, 8, 128>}, {transform_indices = @transform_4, window_bounds = array<i64: 1, 8, 128>}]} {
    %c0 = arith.constant 0 : index
    %c0_0 = arith.constant 0 : index
    %0 = vector.load %arg1[%c0, %c0_0] : memref<1x512xf32, #tpu.memory_space<vmem>>, vector<1x512xf32>
    %c0_1 = arith.constant 0 : index
    %c0_2 = arith.constant 0 : index
    %1 = vector.load %arg2[%c0_1, %c0_2] : memref<1x512xf32, #tpu.memory_space<vmem>>, vector<1x512xf32>
    %c0_3 = arith.constant 0 : index
    %c0_4 = arith.constant 0 : index
    %2 = vector.load %arg3[%c0_3, %c0_4] : memref<1x512xi8, #tpu.memory_space<vmem>>, vector<1x512xi8>
    %3 = arith.sitofp %2 : vector<1x512xi8> to vector<1x512xf32>
    %4 = arith.subf %0, %1 : vector<1x512xf32>
    %5 = arith.mulf %3, %4 : vector<1x512xf32>
    %6 = arith.mulf %5, %4 : vector<1x512xf32>
    %7 = vector.shape_cast %6 : vector<1x512xf32> to vector<1x1x512xf32>
    %cst = arith.constant dense<0.000000e+00> : vector<1xf32>
    %8 = vector.multi_reduction <add>, %7, %cst [1, 2] : vector<1x1x512xf32> to vector<1xf32>
    %9 = vector.shape_cast %8 : vector<1xf32> to vector<1x1x1xf32>
    %10 = vector.extract %9[0, 0, 0] : f32 from vector<1x1x1xf32>
    %11 = vector.broadcast %10 : f32 to vector<1x8x128xf32>
    %c0_5 = arith.constant 0 : index
    %c0_6 = arith.constant 0 : index
    %c0_7 = arith.constant 0 : index
    %12 = vector.load %arg4[%c0_5, %c0_6, %c0_7] : memref<1x8x128xf32, #tpu.memory_space<vmem>>, vector<1x8x128xf32>
    tpu.vector_store %arg4[%c0_5, %c0_6, %c0_7], %11 {strides = array<i32>} : memref<1x8x128xf32, #tpu.memory_space<vmem>>, vector<1x8x128xf32>,
    %13 = vector.shape_cast %3 : vector<1x512xf32> to vector<1x1x512xf32>
    %cst_8 = arith.constant dense<0.000000e+00> : vector<1xf32>
    %14 = vector.multi_reduction <add>, %13, %cst_8 [1, 2] : vector<1x1x512xf32> to vector<1xf32>
    %15 = vector.shape_cast %14 : vector<1xf32> to vector<1x1x1xf32>
    %16 = vector.extract %15[0, 0, 0] : f32 from vector<1x1x1xf32>
    %17 = vector.broadcast %16 : f32 to vector<1x8x128xf32>
    %c0_9 = arith.constant 0 : index
    %c0_10 = arith.constant 0 : index
    %c0_11 = arith.constant 0 : index
    %18 = vector.load %arg5[%c0_9, %c0_10, %c0_11] : memref<1x8x128xf32, #tpu.memory_space<vmem>>, vector<1x8x128xf32>
    tpu.vector_store %arg5[%c0_9, %c0_10, %c0_11], %17 {strides = array<i32>} : memref<1x8x128xf32, #tpu.memory_space<vmem>>, vector<1x8x128xf32>,
    return
  }
  func.func @transform_0(%arg0: i32) -> (i32, i32) {
    %c0_i32 = arith.constant 0 : i32
    %c0_i32_0 = arith.constant 0 : i32
    return %arg0, %c0_i32 : i32, i32
  }
  func.func @transform_1(%arg0: i32) -> (i32, i32) {
    %c0_i32 = arith.constant 0 : i32
    %c0_i32_0 = arith.constant 0 : i32
    return %arg0, %c0_i32 : i32, i32
  }
  func.func @transform_2(%arg0: i32) -> (i32, i32) {
    %c0_i32 = arith.constant 0 : i32
    %c0_i32_0 = arith.constant 0 : i32
    return %arg0, %c0_i32 : i32, i32
  }
  func.func @transform_3(%arg0: i32) -> (i32, i32, i32) {
    %c0_i32 = arith.constant 0 : i32
    %c0_i32_0 = arith.constant 0 : i32
    %c0_i32_1 = arith.constant 0 : i32
    return %arg0, %c0_i32, %c0_i32_0 : i32, i32, i32
  }
  func.func @transform_4(%arg0: i32) -> (i32, i32, i32) {
    %c0_i32 = arith.constant 0 : i32
    %c0_i32_0 = arith.constant 0 : i32
    %c0_i32_1 = arith.constant 0 : i32
    return %arg0, %c0_i32, %c0_i32_0 : i32, i32, i32
  }
}

</mosaic_0001>

<llo_original>
// kernel: mse_loss.1
$region0: #{mse_loss.1}
  #allocation0 [shape = 'u32[]', space=smem, size = 0x4, offset = 0x4, fixed_abs, tag = 'smem constant byte address 0x4 - core index']
  #allocation1 [shape = 'u32[144,128]{1,0:T(1,128)}', space=vmem, size = 0x12000, scoped, tag = 'internal scratch']
  %s0 = inlined_call_operand.vmem [shape: f32[1,512], index: 0, kind: input, shape index: {}]
  %s1 = inlined_call_operand.vmem [shape: f32[1,512], index: 1, kind: input, shape index: {}]
  %s2 = inlined_call_operand.vmem [shape: s8[1,512], index: 2, kind: input, shape index: {}]
  %s3 = inlined_call_operand.vmem [shape: f32[1,8,128], index: 3, kind: output, shape index: {0}]
  %s4 = inlined_call_operand.vmem [shape: f32[1,8,128], index: 4, kind: output, shape index: {1}]
  %5 = xla_tuple %s3, %s4
  %s6 = sld [smem:[#allocation0]]
  $region30: #{mse_loss.1} parent=0
    _
  %s8 = ssub.s32 1, %s6
  %s9 = scalar_select 0, %s8, %s6
  // Predicated region
  $region2: #{mse_loss.1} parent=0 // pred_check
    _
  $region3: #{mse_loss.1} parent=0 // pred_check_branch
    %11 = sbr.rel (0) target = $region5
  $region4: #{mse_loss.1} parent=0 // pred_region
    _
  $region5: #{mse_loss.1} parent=0 // pred_fallthru
    _
  // Predicated region
  $region6: #{mse_loss.1} parent=0 // pred_check
    _
  $region7: #{mse_loss.1} parent=0 // pred_check_branch
    %13 = sbr.rel (0) target = $region9
  $region8: #{mse_loss.1} parent=0 // pred_region
    _
  $region9: #{mse_loss.1} parent=0 // pred_fallthru
    _
  // Predicated region
  $region10: #{mse_loss.1} parent=0 // pred_check
    _
  $region11: #{mse_loss.1} parent=0 // pred_check_branch
    %15 = sbr.rel (0) target = $region13
  $region12: #{mse_loss.1} parent=0 // pred_region
    _
  $region13: #{mse_loss.1} parent=0 // pred_fallthru
    _
  %v16 = vld [vmem:[%s0] sm:$0xf]
  %v17 = vld [vmem:[%s1] sm:$0xf]
  %v18 = vld [vmem:[%s2] sm:$0xf]
  %v19 = vunpack.c.0.s8 %v18
  %v20 = vunpack.c.1.s8 %v18
  %v21 = vcvt.s32.f32 %v19
  %v22 = vcvt.s32.f32 %v20
  %v23 = vsub.f32 %v16, %v17
  %v26 = vunpack.c.l.s4 286326784
  %v27 = vunpack.c.0.s8 %v26
  %v28 = vlaneseq
  %v29 = vshrl.u32 %v28, 7
  %v30 = vsub.s32 %v27, %v29
  %v31 = vrot.slane %v23, %v30
  %v33 = vunpack.c.l.s4 858989090
  %v34 = vunpack.c.0.s8 %v33
  %v35 = vlaneseq
  %v36 = vshrl.u32 %v35, 7
  %v37 = vsub.s32 %v34, %v36
  %v38 = vrot.slane %v23, %v37
  %v41 = vmul.f32 %v21, %v31
  %v42 = vmul.f32 %v22, %v38
  %v43 = vmul.f32 %v41, %v31
  %v44 = vmul.f32 %v42, %v38
  %v47 = vlaneseq
  %v48 = vshrl.u32 %v47, 7
  %v49 = vsub.s32 0, %v48
  %v50 = vrot.slane %v43, %v49
  %v51 = vlaneseq
  %v52 = vshrl.u32 %v51, 7
  %v53 = vsub.s32 4, %v52
  %v54 = vrot.slane %v43, %v53
  %v55 = vlaneseq
  %v56 = vshrl.u32 %v55, 7
  %v57 = vsub.s32 0, %v56
  %v58 = vrot.slane %v44, %v57
  %v59 = vlaneseq
  %v60 = vshrl.u32 %v59, 7
  %v61 = vsub.s32 4, %v60
  %v62 = vrot.slane %v44, %v61
  %vm67 = vcmask 1040384
  %v68 = vsel %vm67, %v50, 0.0
  %v69 = vsel %vm67, %v54, 0.0
  %v70 = vadd.f32 %v68, %v69
  %v71 = vsel %vm67, %v58, 0.0
  %v72 = vadd.f32 %v70, %v71
  %v73 = vsel %vm67, %v62, 0.0
  %v74 = vadd.f32 %v72, %v73
  %75 = vadd.xlane.f32.xlu0 %v74
  %v76 = vpop.xlane.xlu0 %75
  %v77 = vrot.slane %v76, 4
  %v78 = vadd.f32 %v76, %v77
  %v79 = vrot.slane %v78, 2
  %v80 = vadd.f32 %v78, %v79
  %v81 = vrot.slane %v80, 1
  %v82 = vadd.f32 %v80, %v81
  %s83 = vtos %v82
  %v84 = vstv %s83
  %85 = vst [vmem:[%s3] sm:$0xff] %v84
  %v88 = vlaneseq
  %v89 = vshrl.u32 %v88, 7
  %v90 = vsub.s32 0, %v89
  %v91 = vrot.slane %v21, %v90
  %v92 = vlaneseq
  %v93 = vshrl.u32 %v92, 7
  %v94 = vsub.s32 4, %v93
  %v95 = vrot.slane %v21, %v94
  %v96 = vlaneseq
  %v97 = vshrl.u32 %v96, 7
  %v98 = vsub.s32 0, %v97
  %v99 = vrot.slane %v22, %v98
  %v100 = vlaneseq
  %v101 = vshrl.u32 %v100, 7
  %v102 = vsub.s32 4, %v101
  %v103 = vrot.slane %v22, %v102
  %v108 = vsel %vm67, %v91, 0.0
  %v109 = vsel %vm67, %v95, 0.0
  %v110 = vadd.f32 %v108, %v109
  %v111 = vsel %vm67, %v99, 0.0
  %v112 = vadd.f32 %v110, %v111
  %v113 = vsel %vm67, %v103, 0.0
  %v114 = vadd.f32 %v112, %v113
  %115 = vadd.xlane.f32.xlu0 %v114
  %v116 = vpop.xlane.xlu0 %115
  %v117 = vrot.slane %v116, 4
  %v118 = vadd.f32 %v116, %v117
  %v119 = vrot.slane %v118, 2
  %v120 = vadd.f32 %v118, %v119
  %v121 = vrot.slane %v120, 1
  %v122 = vadd.f32 %v120, %v121
  %s123 = vtos %v122
  %v124 = vstv %s123
  %125 = vst [vmem:[%s4] sm:$0xff] %v124
  // Predicated region
  $region14: #{mse_loss.1} parent=0 // pred_check
    _
  $region15: #{mse_loss.1} parent=0 // pred_check_branch
    %127 = sbr.rel (0) target = $region17
  $region16: #{mse_loss.1} parent=0 // pred_region
    _
  $region17: #{mse_loss.1} parent=0 // pred_fallthru
    _
  // Predicated region
  $region18: #{mse_loss.1} parent=0 // pred_check
    _
  $region19: #{mse_loss.1} parent=0 // pred_check_branch
    %129 = sbr.rel (0) target = $region21
  $region20: #{mse_loss.1} parent=0 // pred_region
    _
  $region21: #{mse_loss.1} parent=0 // pred_fallthru
    _
  // Predicated region
  $region22: #{mse_loss.1} parent=0 // pred_check
    _
  $region23: #{mse_loss.1} parent=0 // pred_check_branch
    %131 = sbr.rel (0) target = $region25
  $region24: #{mse_loss.1} parent=0 // pred_region
    _
  $region25: #{mse_loss.1} parent=0 // pred_fallthru
    _
  // Predicated region
  $region26: #{mse_loss.1} parent=0 // pred_check
    _
  $region27: #{mse_loss.1} parent=0 // pred_check_branch
    %133 = sbr.rel (0) target = $region29
  $region28: #{mse_loss.1} parent=0 // pred_region
    _
  $region29: #{mse_loss.1} parent=0 // pred_fallthru
    _

</llo_original>
